<compile_context>
chip_gen: v5e
topology: v5e:2x2
jax: 0.10.0
libtpu: 0.0.40
codegen_flags: <defaults>
</compile_context>

<pallas_src>
import functools
import math

import jax
import jax.numpy as jnp
import numpy as np
from jax import lax
from jax.experimental import pallas as pl
from jax.experimental.pallas import tpu as pltpu


# ----------------------------- host-side setup ------------------------------

def _gaussian_1d_erf(sigma: float, truncated: float = 4.0) -> np.ndarray:
    """MONAI gaussian_1d(..., approx='erf', normalize=False), computed on host."""
    sigma = abs(float(sigma))
    tail = int(max(sigma * truncated, 0.5) + 0.5)
    xs = np.arange(-tail, tail + 1, dtype=np.float64)
    t = math.inf if sigma == 0.0 else 0.70710678 / sigma   # sigma=0 -> [0, 1, 0]
    out = np.array(
        [0.5 * (math.erf(t * (v + 0.5)) - math.erf(t * (v - 0.5))) for v in xs]
    )
    return np.clip(out, 0.0, None)


def _conv_operator(n: int, taps: np.ndarray) -> np.ndarray:
    """(n, n) matrix A with (A @ v)[i] = sum_t taps[t] * v[i + t - p], zero padded."""
    p = (len(taps) - 1) // 2
    a = np.zeros((n, n), dtype=np.float64)
    for t, w in enumerate(taps):
        a += w * np.eye(n, k=t - p)   # out-of-range taps dropped == mode='zeros'
    return a


def _split_bf16(m_np):
    """Host-side bf16 hi/lo split of an f32 operator (hoisted out of the kernel)."""
    m = jnp.asarray(np.asarray(m_np), dtype=jnp.float32)
    hi = m.astype(jnp.bfloat16)
    lo = (m - hi.astype(jnp.float32)).astype(jnp.bfloat16)
    return hi, lo


def _chip_params():
    """(physical VMEM bytes, #TensorCores sharing the grid, fused-path hw cutoff)."""
    kind = ""
    try:
        kind = jax.devices()[0].device_kind.lower()
    except Exception:
        pass
    if ("v5 lite" in kind) or ("v5e" in kind) or ("v5lite" in kind):
        return 128 << 20, 1, 320      # v5e: low FLOP/byte ratio -> small fused cutoff
    if "v6" in kind:
        return 128 << 20, 1, 1024     # v6e: 1 TC, 128 MiB VMEM
    if "v7" in kind:
        return 64 << 20, 2, 1024      # v7x: 2 TCs, 64 MiB VMEM per TC
    return 64 << 20, 2, 512           # unknown / older: conservative defaults


def _pick_tile(n: int, target: int, prefer_multiple_of_8: bool = False) -> int:
    """Largest divisor of n that is <= target; optionally prefer a multiple of 8
    (sublane-exact blocks) when one of comparable size exists."""
    target = max(1, min(n, target))
    best = 1
    best8 = 0
    for cand in range(target, 0, -1):
        if n % cand:
            continue
        if best == 1:
            best = cand
        if prefer_multiple_of_8 and cand % 8 == 0:
            best8 = cand
            break
        if not prefer_multiple_of_8:
            break
    if best8 and 2 * best8 > best:
        return best8
    return best


# ------------------------------- kernel bodies ------------------------------

def _fused_conv_kernel(x_ref, op_hi_ref, op_lo_ref, o_ref, *, split_x):
    # x_ref: (P, H*W) flattened planes (lane-dense rows).
    # op_hi/op_lo: (H*W, H*W) bf16 hi/lo split of the fused separable operator,
    # precomputed on the host and resident in VMEM.
    if split_x:
        x = x_ref[...].astype(jnp.float32)
        x_hi = x.astype(jnp.bfloat16)
    else:
        x_hi = x_ref[...].astype(jnp.bfloat16)
    acc = jnp.dot(x_hi, op_hi_ref[...], preferred_element_type=jnp.float32)
    acc += jnp.dot(x_hi, op_lo_ref[...], preferred_element_type=jnp.float32)
    if split_x:  # skipped for bf16 inputs (x_lo == 0): 2 MXU passes instead of 3
        x_lo = (x - x_hi.astype(jnp.float32)).astype(jnp.bfloat16)
        acc += jnp.dot(x_lo, op_hi_ref[...], preferred_element_type=jnp.float32)
    o_ref[...] = acc.astype(o_ref.dtype)


def _separable_conv_kernel(x_ref, ah_hi_ref, ah_lo_ref, rw_hi_ref, rw_lo_ref,
                           o_ref, *, split_x, unroll):
    # x_ref / o_ref: (P, H, W). Per-plane y_i = A_h @ x_i @ R_w with host-split
    # bf16 hi/lo operators (no kron(eye(P), A_h) zero-multiply waste).
    p = x_ref.shape[0]
    ah_hi = ah_hi_ref[...]
    ah_lo = ah_lo_ref[...]
    rw_hi = rw_hi_ref[...]
    rw_lo = rw_lo_ref[...]

    def plane(i, carry):
        if split_x:
            x = x_ref[i].astype(jnp.float32)          # (H, W)
            x_hi = x.astype(jnp.bfloat16)
        else:
            x_hi = x_ref[i].astype(jnp.bfloat16)
        # H-conv, ~f32 accurate
        u = jnp.dot(ah_hi, x_hi, preferred_element_type=jnp.float32)
        u += jnp.dot(ah_lo, x_hi, preferred_element_type=jnp.float32)
        if split_x:
            x_lo = (x - x_hi.astype(jnp.float32)).astype(jnp.bfloat16)
            u += jnp.dot(ah_hi, x_lo, preferred_element_type=jnp.float32)
        # W-conv, ~f32 accurate (split the f32 intermediate)
        u_hi = u.astype(jnp.bfloat16)
        u_lo = (u - u_hi.astype(jnp.float32)).astype(jnp.bfloat16)
        acc = jnp.dot(u_hi, rw_hi, preferred_element_type=jnp.float32)
        acc += jnp.dot(u_hi, rw_lo, preferred_element_type=jnp.float32)
        acc += jnp.dot(u_lo, rw_hi, preferred_element_type=jnp.float32)
        o_ref[i] = acc.astype(o_ref.dtype)
        return carry

    lax.fori_loop(0, p, plane, 0, unroll=unroll)


# ---------------------------------- wrapper ----------------------------------

def gaussian_filter(x, sigma=(1.0, 1.5), truncated: float = 4.0, *,
                    force_separable: bool = False):
    """Equivalent of MONAI GaussianFilter(spatial_dims=2, sigma, truncated, approx='erf')(x)."""
    B, C, H, W = x.shape
    if not isinstance(sigma, (tuple, list)):
        sigma = (sigma, sigma)
    kh = _gaussian_1d_erf(sigma[0], truncated)    # taps along H (spatial dim 0)
    kw = _gaussian_1d_erf(sigma[1], truncated)    # taps along W (spatial dim 1)

    a_h = _conv_operator(H, kh)       # left operator: mixes rows along H
    r_w = _conv_operator(W, kw).T     # right operator: mixes columns along W

    n = B * C
    hw = H * W
    itemsize = np.dtype(x.dtype).itemsize
    split_x = (x.dtype != jnp.bfloat16)           # bf16 inputs skip the x_lo pass

    vmem_phys, num_tc, fused_cutoff = _chip_params()
    big_vmem = vmem_phys >= (128 << 20)
    vmem_cap = (96 << 20) if big_vmem else (48 << 20)     # scoped-VMEM ceiling
    block_cap = (6 << 20) if big_vmem else (4 << 20)      # x bytes per grid step
    op_cap = (24 << 20) if big_vmem else (16 << 20)       # resident operator budget

    # Fused Kronecker operator footprint: (hi + lo) bf16, double-buffered by Pallas.
    fused_op_resident = 2 * 2 * hw * hw * 2
    fused_fits = fused_op_resident <= op_cap
    use_fused = (not force_separable) and fused_fits and (hw <= fused_cutoff or W < 128)

    # Planes per grid step: big blocks (amortize ~0.35us/step), but keep >=2
    # pipeline steps per TensorCore on 2-TC chips. 1-TC chips take the largest
    # block that fits the byte cap.
    plane_bytes = hw * itemsize
    p_cap_bytes = max(1, block_cap // plane_bytes)
    if num_tc >= 2 and n >= 2:
        steps_target = min(n, 2 * num_tc)
        p_cap_par = max(1, n // steps_target)
    else:
        p_cap_par = n

    if use_fused:
        # Single lane-dense matmul per block: (P, H*W) @ (H*W, H*W).
        p = _pick_tile(n, min(p_cap_bytes, p_cap_par), prefer_multiple_of_8=True)
        g = n // p
        op = np.kron(a_h.T, r_w)                  # fused separable operator
        op_hi, op_lo = _split_bf16(op)            # host-side bf16 hi/lo split
        xr = x.reshape(g, p, hw)                  # free metadata reshape
        kernel = functools.partial(_fused_conv_kernel, split_x=split_x)
        operands = (xr, op_hi, op_lo)
        in_specs = [
            pl.BlockSpec((None, p, hw), lambda i: (i, 0, 0)),   # squeezed leading dim
            pl.BlockSpec((hw, hw), lambda i: (0, 0)),           # operator stays resident
            pl.BlockSpec((hw, hw), lambda i: (0, 0)),
        ]
        out_specs = pl.BlockSpec((None, p, hw), lambda i: (i, 0, 0))
        out_shape = jax.ShapeDtypeStruct((g, p, hw), x.dtype)
        block_bytes = p * hw * itemsize
        op_resident = fused_op_resident           # already counts double-buffering
        temp_bytes = 4 * p * hw * 4               # x f32 + hi/lo + acc
    else:
        # Per-plane A_h @ x_i @ R_w (no block-diagonal zero waste).
        # TODO(synk): intra-plane tiling for planes that do not fit VMEM, and
        # lane-packing of ceil(128/W) planes when W < 128.
        p = _pick_tile(n, min(p_cap_bytes, p_cap_par))
        g = n // p
        ah_hi, ah_lo = _split_bf16(a_h)
        rw_hi, rw_lo = _split_bf16(r_w)
        xr = x.reshape(g, p, H, W)                # free metadata reshape
        kernel = functools.partial(_separable_conv_kernel, split_x=split_x,
                                   unroll=bool(p <= 8))
        operands = (xr, ah_hi, ah_lo, rw_hi, rw_lo)
        in_specs = [
            pl.BlockSpec((None, p, H, W), lambda i: (i, 0, 0, 0)),
            pl.BlockSpec((H, H), lambda i: (0, 0)),
            pl.BlockSpec((H, H), lambda i: (0, 0)),
            pl.BlockSpec((W, W), lambda i: (0, 0)),
            pl.BlockSpec((W, W), lambda i: (0, 0)),
        ]
        out_specs = pl.BlockSpec((None, p, H, W), lambda i: (i, 0, 0, 0))
        out_shape = jax.ShapeDtypeStruct((g, p, H, W), x.dtype)
        block_bytes = p * hw * itemsize
        op_resident = 2 * 2 * (H * H + W * W) * 2   # (hi+lo) bf16, double-buffered
        temp_bytes = 8 * hw * 4                     # per-plane loop temporaries

    # 2 in-blocks + 2 out-blocks (double-buffered) + resident operators (x2) +
    # kernel temporaries + headroom, clamped to a generation-aware ceiling.
    vmem_limit = op_resident + 4 * block_bytes + temp_bytes + (8 << 20)
    vmem_limit = int(min(vmem_cap, max(32 << 20, vmem_limit)))

    out = pl.pallas_call(
        kernel,
        out_shape=out_shape,
        grid=(g,),
        in_specs=in_specs,
        out_specs=out_specs,
        compiler_params=pltpu.CompilerParams(
            dimension_semantics=("parallel",),
            vmem_limit_bytes=vmem_limit,
        ),
    )(*operands)
    return out.reshape(B, C, H, W)


# ------------------------------ reference check ------------------------------

def _reference_np(x_np, sigma, truncated):
    """Numpy reference: zero-padded separable cross-correlation (MONAI semantics)."""
    kh = _gaussian_1d_erf(sigma[0], truncated)
    kw = _gaussian_1d_erf(sigma[1], truncated)
    _, _, H, W = x_np.shape
    ph, pw = (len(kh) - 1) // 2, (len(kw) - 1) // 2
    xp = np.pad(x_np.astype(np.float64), ((0, 0), (0, 0), (ph, ph), (0, 0)))
    yh = sum(kh[t] * xp[:, :, t:t + H, :] for t in range(len(kh)))
    yp = np.pad(yh, ((0, 0), (0, 0), (0, 0), (pw, pw)))
    y = sum(kw[t] * yp[:, :, :, t:t + W] for t in range(len(kw)))
    return y.astype(np.float32)


if __name__ == "__main__":
    key = jax.random.PRNGKey(0)
    # (Batch, chns, H, W) as in the module docstring
    x = jax.random.normal(key, (2, 4, 16, 16), dtype=jnp.float32)

    sigma = (1.0, 1.5)     # spatial_dims=2, per-dim sigma (fixed, requires_grad=False)
    truncated = 4.0

    ref = _reference_np(np.asarray(x), sigma, truncated)

    # Primary (fused lane-dense) path, f32 input (3 MXU passes).
    out = jax.block_until_ready(gaussian_filter(x, sigma=sigma, truncated=truncated))
    assert out.shape == x.shape and out.dtype == x.dtype
    np.testing.assert_allclose(np.asarray(out), ref, atol=5e-4, rtol=5e-4)

    # Separable (per-plane two-matmul) fallback path.
    out2 = jax.block_until_ready(
        gaussian_filter(x, sigma=sigma, truncated=truncated, force_separable=True))
    np.testing.assert_allclose(np.asarray(out2), ref, atol=5e-4, rtol=5e-4)

    # bf16 input exercises the reduced 2-pass variant (x_lo skipped).
    xb = x.astype(jnp.bfloat16)
    ref_b = _reference_np(np.asarray(xb).astype(np.float32), sigma, truncated)
    out3 = jax.block_until_ready(gaussian_filter(xb, sigma=sigma, truncated=truncated))
    assert out3.dtype == xb.dtype
    np.testing.assert_allclose(np.asarray(out3).astype(np.float32), ref_b,
                               atol=2e-2, rtol=2e-2)

    print("KERNEL_OK")
</pallas_src>

<mosaic_0001>
module attributes {stable_mosaic.version = 11 : i64} {
  func.func @_fused_conv_kernel(%arg0: i32, %arg1: memref<1x2x256xf32, #tpu.memory_space<vmem>>, %arg2: memref<256x256xbf16, #tpu.memory_space<vmem>>, %arg3: memref<256x256xbf16, #tpu.memory_space<vmem>>, %arg4: memref<1x2x256xf32, #tpu.memory_space<vmem>>) attributes {dimension_semantics = [#tpu.dimension_semantics<parallel>], iteration_bounds = array<i64: 4>, scalar_prefetch = 0 : i64, scratch_operands = 0 : i64, tpu.core_type = #tpu.core_type<tc>, window_params = [{transform_indices = @transform_0, window_bounds = array<i64: 1, 2, 256>}, {pipeline_mode = #tpu.pipeline_mode<synchronous>, transform_indices = @transform_1, window_bounds = array<i64: 256, 256>}, {pipeline_mode = #tpu.pipeline_mode<synchronous>, transform_indices = @transform_2, window_bounds = array<i64: 256, 256>}, {transform_indices = @transform_3, window_bounds = array<i64: 1, 2, 256>}]} {
    %c0 = arith.constant 0 : index
    %c0_0 = arith.constant 0 : index
    %c0_1 = arith.constant 0 : index
    %0 = vector.load %arg1[%c0, %c0_0, %c0_1] : memref<1x2x256xf32, #tpu.memory_space<vmem>>, vector<1x2x256xf32>
    %1 = vector.shape_cast %0 : vector<1x2x256xf32> to vector<2x256xf32>
    %2 = arith.truncf %1 : vector<2x256xf32> to vector<2x256xbf16>
    %c0_2 = arith.constant 0 : index
    %c0_3 = arith.constant 0 : index
    %3 = vector.load %arg2[%c0_2, %c0_3] : memref<256x256xbf16, #tpu.memory_space<vmem>>, vector<256x256xbf16>
    %cst = arith.constant dense<0.000000e+00> : vector<2x256xf32>
    %4 = tpu.matmul %2, %3, %cst {dimension_numbers = #tpu.dot_dimension_numbers<[1], [0], [0], [1], [0, 0, 1, 1], [], []>} : vector<2x256xbf16>, vector<256x256xbf16>, vector<2x256xf32> -> vector<2x256xf32>
    %c0_4 = arith.constant 0 : index
    %c0_5 = arith.constant 0 : index
    %5 = vector.load %arg3[%c0_4, %c0_5] : memref<256x256xbf16, #tpu.memory_space<vmem>>, vector<256x256xbf16>
    %cst_6 = arith.constant dense<0.000000e+00> : vector<2x256xf32>
    %6 = tpu.matmul %2, %5, %cst_6 {dimension_numbers = #tpu.dot_dimension_numbers<[1], [0], [0], [1], [0, 0, 1, 1], [], []>} : vector<2x256xbf16>, vector<256x256xbf16>, vector<2x256xf32> -> vector<2x256xf32>
    %7 = arith.addf %4, %6 : vector<2x256xf32>
    %8 = arith.extf %2 : vector<2x256xbf16> to vector<2x256xf32>
    %9 = arith.subf %1, %8 : vector<2x256xf32>
    %10 = arith.truncf %9 : vector<2x256xf32> to vector<2x256xbf16>
    %c0_7 = arith.constant 0 : index
    %c0_8 = arith.constant 0 : index
    %11 = vector.load %arg2[%c0_7, %c0_8] : memref<256x256xbf16, #tpu.memory_space<vmem>>, vector<256x256xbf16>
    %cst_9 = arith.constant dense<0.000000e+00> : vector<2x256xf32>
    %12 = tpu.matmul %10, %11, %cst_9 {dimension_numbers = #tpu.dot_dimension_numbers<[1], [0], [0], [1], [0, 0, 1, 1], [], []>} : vector<2x256xbf16>, vector<256x256xbf16>, vector<2x256xf32> -> vector<2x256xf32>
    %13 = arith.addf %7, %12 : vector<2x256xf32>
    %c0_10 = arith.constant 0 : index
    %c0_11 = arith.constant 0 : index
    %c0_12 = arith.constant 0 : index
    %14 = vector.load %arg4[%c0_10, %c0_11, %c0_12] : memref<1x2x256xf32, #tpu.memory_space<vmem>>, vector<1x2x256xf32>
    %15 = vector.shape_cast %14 : vector<1x2x256xf32> to vector<2x256xf32>
    %16 = vector.shape_cast %13 : vector<2x256xf32> to vector<1x2x256xf32>
    tpu.vector_store %arg4[%c0_10, %c0_11, %c0_12], %16 {strides = array<i32>} : memref<1x2x256xf32, #tpu.memory_space<vmem>>, vector<1x2x256xf32>,
    return
  }
  func.func @transform_0(%arg0: i32) -> (i32, i32, i32) {
    %c0_i32 = arith.constant 0 : i32
    %c0_i32_0 = arith.constant 0 : i32
    %c0_i32_1 = arith.constant 0 : i32
    return %arg0, %c0_i32, %c0_i32_0 : i32, i32, i32
  }
  func.func @transform_1(%arg0: i32) -> (i32, i32) {
    %c0_i32 = arith.constant 0 : i32
    %c0_i32_0 = arith.constant 0 : i32
    %c0_i32_1 = arith.constant 0 : i32
    return %c0_i32, %c0_i32_0 : i32, i32
  }
  func.func @transform_2(%arg0: i32) -> (i32, i32) {
    %c0_i32 = arith.constant 0 : i32
    %c0_i32_0 = arith.constant 0 : i32
    %c0_i32_1 = arith.constant 0 : i32
    return %c0_i32, %c0_i32_0 : i32, i32
  }
  func.func @transform_3(%arg0: i32) -> (i32, i32, i32) {
    %c0_i32 = arith.constant 0 : i32
    %c0_i32_0 = arith.constant 0 : i32
    %c0_i32_1 = arith.constant 0 : i32
    return %arg0, %c0_i32, %c0_i32_0 : i32, i32, i32
  }
}

</mosaic_0001>

<llo_original>
// kernel: tpu_custom_call.1
$region0: #{tpu_custom_call.1}
  #allocation0 [shape = 'u32[]', space=smem, size = 0x4, offset = 0x4, fixed_abs, tag = 'smem constant byte address 0x4 - core index']
  #allocation1 [shape = 'u32[72,128]{1,0:T(1,128)}', space=vmem, size = 0x9000, scoped, tag = 'internal scratch']
  %s0 = inlined_call_operand.hbm [shape: f32[4,2,256], index: 0, kind: input, shape index: {}]
  %s1 = inlined_call_operand.hbm [shape: bf16[256,256], index: 1, kind: input, shape index: {}]
  %s2 = inlined_call_operand.hbm [shape: bf16[256,256], index: 2, kind: input, shape index: {}]
  %s3 = inlined_call_operand.hbm [shape: f32[4,2,256], index: 3, kind: output, shape index: {}]
  %s4 = sld [smem:[#allocation0]]
  $region57: #{tpu_custom_call.1} parent=0
    _
  %s6 = ssub.s32 1, %s4
  %s7 = scalar_select 0, %s6, %s4
  $region1: #{tpu_custom_call.1} parent=0
    #allocation2 [shape = 'u8[4096]{0}', space=vmem, size = 0x1000, scoped, tag = 'input window, operand 0']
    #allocation3 [shape = 's32[2]{0}', space=sflag, size = 0x8, scoped, tag = 'scoped memory for tpu_custom_call.1']
    #allocation4 [shape = 's32[2]{0}', space=sflag, size = 0x8, scoped, tag = 'scoped memory for tpu_custom_call.1']
    #allocation5 [shape = 'u8[131072]{0}', space=vmem, size = 0x20000, scoped, tag = 'input window, operand 1, single buffered']
    #allocation6 [shape = 's32[1]{0}', space=sflag, size = 0x4, scoped, tag = 'scoped memory for tpu_custom_call.1']
    #allocation7 [shape = 'u8[131072]{0}', space=vmem, size = 0x20000, scoped, tag = 'input window, operand 2, single buffered']
    #allocation8 [shape = 'u8[4096]{0}', space=vmem, size = 0x1000, scoped, tag = 'output window, operand 0']
    %8 = vsyncpa [#allocation3], 0
    %s9 = scalar_lea.sflag [#allocation3], 1
    %10 = vsyncpa %s9, 0
    %11 = vsyncpa [#allocation6], 0
    %12 = vsyncpa [#allocation4], 0
    %s13 = scalar_lea.sflag [#allocation4], 1
    %14 = vsyncpa %s13, 0
    loop: start=0, step=1, limit=6
    $region2: #{tpu_custom_call.1} parent=1 // loop_pre_header
      _
    $region3: #{tpu_custom_call.1} parent=1 // loop_header
      %s16 = sphi 0, %s20
      %p17 = scmp.ge.s32.totalorder %s16, 6
      %s26 = sphi 0, %s28
      %s29 = sphi 0, %s26
      %s30 = sphi 0, %s29
      %s46 = sphi 0, %s30
      %s50 = sphi 0, %s50
      %s52 = sphi 0, %s50
      %s53 = sphi 0, %s52
      %s67 = sphi 0, %s53
      %s71 = sphi 0, %s71
      %s73 = sphi 0, %s71
      %s74 = sphi 0, %s73
      %s88 = sphi 0, %s74
      %s94 = sphi 0, %s96
      %s97 = sphi 0, %s94
      %s98 = sphi 0, %s97
      %s114 = sphi 0, %s98
    $region4: #{tpu_custom_call.1} parent=1 // loop_header_branch
      %19 = sbr.rel (%p17) target = $region8
    $region5: #{tpu_custom_call.1} parent=1 // loop_body
      %s21 = ssub.s32 %s16, 1
      %s22 = ssub.s32 %s16, 2
      %s23 = sadd.s32 %s16, 1
      %s24 = ssub.s32 %s16, %s23
      %p25 = scmp.eq.s32.totalorder %s24, 0
      %s27 = sadd.s32 %s26, 1
      %s28 = scalar_select %p25, %s26, %s27
      %p31 = pneg %p25
      %p32 = scmp.eq.s32.totalorder %s16, 3
      %p33 = por %p31, %p32
      %p34 = scmp.ne.s32.totalorder %s26, %s29
      %p35 = scmp.eq.s32.totalorder %s16, 0
      %p36 = por %p34, %p35
      %p37 = scmp.ne.s32.totalorder %s26, %s29
      %p38 = scmp.eq.s32.totalorder %s21, 3
      %p39 = por %p37, %p38
      %p40 = scmp.ne.s32.totalorder %s29, %s30
      %p41 = scmp.eq.s32.totalorder %s21, 0
      %p42 = por %p40, %p41
      %p43 = scmp.ne.s32.totalorder %s29, %s30
      %p44 = scmp.eq.s32.totalorder %s22, 3
      %p45 = por %p43, %p44
      %p47 = scmp.ne.s32.totalorder %s30, %s46
      %p48 = scmp.eq.s32.totalorder %s22, 0
      %p49 = por %p47, %p48
      %s51 = sadd.s32 %s50, 1
      %p54 = scmp.eq.s32.totalorder %s16, 3
      %p55 = scmp.ne.s32.totalorder %s50, %s52
      %p56 = scmp.eq.s32.totalorder %s16, 0
      %p57 = por %p55, %p56
      %p58 = scmp.ne.s32.totalorder %s50, %s52
      %p59 = scmp.eq.s32.totalorder %s21, 3
      %p60 = por %p58, %p59
      %p61 = scmp.ne.s32.totalorder %s52, %s53
      %p62 = scmp.eq.s32.totalorder %s21, 0
      %p63 = por %p61, %p62
      %p64 = scmp.ne.s32.totalorder %s52, %s53
      %p65 = scmp.eq.s32.totalorder %s22, 3
      %p66 = por %p64, %p65
      %p68 = scmp.ne.s32.totalorder %s53, %s67
      %p69 = scmp.eq.s32.totalorder %s22, 0
      %p70 = por %p68, %p69
      %s72 = sadd.s32 %s71, 1
      %p75 = scmp.eq.s32.totalorder %s16, 3
      %p76 = scmp.ne.s32.totalorder %s71, %s73
      %p77 = scmp.eq.s32.totalorder %s16, 0
      %p78 = por %p76, %p77
      %p79 = scmp.ne.s32.totalorder %s71, %s73
      %p80 = scmp.eq.s32.totalorder %s21, 3
      %p81 = por %p79, %p80
      %p82 = scmp.ne.s32.totalorder %s73, %s74
      %p83 = scmp.eq.s32.totalorder %s21, 0
      %p84 = por %p82, %p83
      %p85 = scmp.ne.s32.totalorder %s73, %s74
      %p86 = scmp.eq.s32.totalorder %s22, 3
      %p87 = por %p85, %p86
      %p89 = scmp.ne.s32.totalorder %s74, %s88
      %p90 = scmp.eq.s32.totalorder %s22, 0
      %p91 = por %p89, %p90
      %s92 = ssub.s32 %s16, %s23
      %p93 = scmp.eq.s32.totalorder %s92, 0
      %s95 = sadd.s32 %s94, 1
      %s96 = scalar_select %p93, %s94, %s95
      %p99 = pneg %p93
      %p100 = scmp.eq.s32.totalorder %s16, 3
      %p101 = por %p99, %p100
      %p102 = scmp.ne.s32.totalorder %s94, %s97
      %p103 = scmp.eq.s32.totalorder %s16, 0
      %p104 = por %p102, %p103
      %p105 = scmp.ne.s32.totalorder %s94, %s97
      %p106 = scmp.eq.s32.totalorder %s21, 3
      %p107 = por %p105, %p106
      %p108 = scmp.ne.s32.totalorder %s97, %s98
      %p109 = scmp.eq.s32.totalorder %s21, 0
      %p110 = por %p108, %p109
      %p111 = scmp.ne.s32.totalorder %s97, %s98
      %p112 = scmp.eq.s32.totalorder %s22, 3
      %p113 = por %p111, %p112
      %p115 = scmp.ne.s32.totalorder %s98, %s114
      %p116 = scmp.eq.s32.totalorder %s22, 0
      %p117 = por %p115, %p116
      %p118 = scmp.le.s32.totalorder 1, %s16
      %p119 = scmp.lt.s32.totalorder %s16, 5
      %p120 = pnand %p118, %p119
      %p121 = pneg %p120
      // Predicated region
      $region9: #{tpu_custom_call.1} parent=5 // pred_check
        _
      $region10: #{tpu_custom_call.1} parent=5 // pred_check_branch
        %123 = sbr.rel (%p120) target = $region12
      $region11: #{tpu_custom_call.1} parent=5 // pred_region
        %s124 = ssub.s32 %s16, 1
        // Predicated region
        $region13: #{tpu_custom_call.1} parent=11 // pred_check
          %p125 = pneg %p63
        $region14: #{tpu_custom_call.1} parent=11 // pred_check_branch
          %127 = sbr.rel (%p125) target = $region16
        $region15: #{tpu_custom_call.1} parent=11 // pred_region
          %129 = vsyncadd [#allocation6], 0
          %s130 = sshll.u32 %s1, 4
          %s131 = int_to_ptr.hbm [resolvable:$true] %s130
          %s132 = sshll.u32 [#allocation5], 4
          %s133 = int_to_ptr.vmem [resolvable:$true] %s132
          %138 = dma.hbm_to_vmem [thread:$0]  %s131, 4096, %s133, [#allocation6], 128, 128, 8
        $region16: #{tpu_custom_call.1} parent=11 // pred_fallthru
          _
        // Predicated region
        $region17: #{tpu_custom_call.1} parent=11 // pred_check
          %p139 = pneg %p84
        $region18: #{tpu_custom_call.1} parent=11 // pred_check_branch
          %141 = sbr.rel (%p139) target = $region20
        $region19: #{tpu_custom_call.1} parent=11 // pred_region
          %143 = vsyncadd [#allocation6], 0
          %s144 = sshll.u32 %s2, 4
          %s145 = int_to_ptr.hbm [resolvable:$true] %s144
          %s146 = sshll.u32 [#allocation7], 4
          %s147 = int_to_ptr.vmem [resolvable:$true] %s146
          %152 = dma.hbm_to_vmem [thread:$0]  %s145, 4096, %s147, [#allocation6], 128, 128, 8
        $region20: #{tpu_custom_call.1} parent=11 // pred_fallthru
          _
      $region12: #{tpu_custom_call.1} parent=5 // pred_fallthru
        _
      %p153 = scmp.lt.s32.totalorder %s16, 4
      // Predicated region
      $region21: #{tpu_custom_call.1} parent=5 // pred_check
        %p154 = pneg %p153
      $region22: #{tpu_custom_call.1} parent=5 // pred_check_branch
        %156 = sbr.rel (%p154) target = $region24
      $region23: #{tpu_custom_call.1} parent=5 // pred_region
        // Predicated region
        $region25: #{tpu_custom_call.1} parent=23 // pred_check
          %p157 = pneg %p36
        $region26: #{tpu_custom_call.1} parent=23 // pred_check_branch
          %159 = sbr.rel (%p157) target = $region28
        $region27: #{tpu_custom_call.1} parent=23 // pred_region
          %s160 = sand.u32 %s26, 1
          %s161 = scalar_lea.sflag [#allocation3], %s160
          %s162 = sand.u32 %s26, 1
          %s163 = smul.addr %s162, 4
          %s164 = scalar_lea.vmem [#allocation2], %s163
          %166 = vsyncadd %s161, 0
          %s167 = smul.addr %s16, 2
          %s168 = smul.addr %s167, 2
          %s169 = scalar_lea.hbm %s0, %s168
          %s171 = sshll.u32 %s169, 4
          %s172 = int_to_ptr.hbm [resolvable:$true] %s171
          %s173 = sshll.u32 %s164, 4
          %s174 = int_to_ptr.vmem [resolvable:$true] %s173
          %176 = dma.hbm_to_vmem [thread:$0]  %s172, 64, %s174, %s161
        $region28: #{tpu_custom_call.1} parent=23 // pred_fallthru
          _
      $region24: #{tpu_custom_call.1} parent=5 // pred_fallthru
        _
      %p177 = scmp.le.s32.totalorder 1, %s16
      %p178 = scmp.lt.s32.totalorder %s16, 5
      %p179 = pnand %p177, %p178
      %p180 = pneg %p179
      // Predicated region
      $region29: #{tpu_custom_call.1} parent=5 // pred_check
        _
      $region30: #{tpu_custom_call.1} parent=5 // pred_check_branch
        %182 = sbr.rel (%p179) target = $region32
      $region31: #{tpu_custom_call.1} parent=5 // pred_region
        %s183 = ssub.s32 %s16, 1
        %s184 = sand.u32 %s29, 1
        %s185 = scalar_lea.sflag [#allocation3], %s184
        %s186 = sand.u32 %s29, 1
        %s187 = smul.addr %s186, 4
        %s188 = scalar_lea.vmem [#allocation2], %s187
        // Predicated region
        $region33: #{tpu_custom_call.1} parent=31 // pred_check
          %p189 = pneg %p42
        $region34: #{tpu_custom_call.1} parent=31 // pred_check_branch
          %191 = sbr.rel (%p189) target = $region36
        $region35: #{tpu_custom_call.1} parent=31 // pred_region
          %193 = dma.done %s185, 64
        $region36: #{tpu_custom_call.1} parent=31 // pred_fallthru
          _
        // Predicated region
        $region37: #{tpu_custom_call.1} parent=31 // pred_check
          %p194 = pneg %p63
        $region38: #{tpu_custom_call.1} parent=31 // pred_check_branch
          %196 = sbr.rel (%p194) target = $region40
        $region39: #{tpu_custom_call.1} parent=31 // pred_region
          %198 = dma.done [#allocation6], 4096
        $region40: #{tpu_custom_call.1} parent=31 // pred_fallthru
          _
        // Predicated region
        $region41: #{tpu_custom_call.1} parent=31 // pred_check
          %p199 = pneg %p84
        $region42: #{tpu_custom_call.1} parent=31 // pred_check_branch
          %201 = sbr.rel (%p199) target = $region44
        $region43: #{tpu_custom_call.1} parent=31 // pred_region
          %203 = dma.done [#allocation6], 4096
        $region44: #{tpu_custom_call.1} parent=31 // pred_fallthru
          _
        %s204 = sand.u32 %s29, 1
        %s205 = scalar_lea.sflag [#allocation3], %s204
        %s206 = sand.u32 %s29, 1
        %s207 = smul.addr %s206, 4
        %s208 = scalar_lea.vmem [#allocation2], %s207
        %p209 = pneg %p42
        %p210 = pneg %p39
        %p211 = pneg %p63
        %p212 = pneg %p60
        %p213 = pneg %p84
        %p214 = pneg %p81
        %p215 = pneg %p110
        %p216 = pneg %p107
        %s217 = sand.u32 %s97, 1
        %s218 = scalar_lea.sflag [#allocation4], %s217
        %s219 = sand.u32 %s97, 1
        %s220 = smul.addr %s219, 4
        %s221 = scalar_lea.vmem [#allocation8], %s220
        %v222 = vld [vmem:[%s188] sm:$0xf]
        %224 = vst [vmem:[#allocation1] ss:$4 sm:$0xff] %v222
        %v225 = vld.sshfl [vmem:[#allocation1] sm:$0xff pattern:$0x73625140]
        %v226 = vld.sshfl [vmem:[#allocation1 + $0x8] sm:$0xff pattern:$0x73625140]
        %v229 = vpack.c.bf16 %v226, %v225
        %v230 = vld [vmem:[#allocation5] sm:$0xff]
        %v231 = vld [vmem:[#allocation5 + $0x8] sm:$0xff]
        %v232 = vld [vmem:[#allocation5 + $0x10] sm:$0xff]
        %v233 = vld [vmem:[#allocation5 + $0x18] sm:$0xff]
        %v234 = vld [vmem:[#allocation5 + $0x20] sm:$0xff]
        %v235 = vld [vmem:[#allocation5 + $0x28] sm:$0xff]
        %v236 = vld [vmem:[#allocation5 + $0x30] sm:$0xff]
        %v237 = vld [vmem:[#allocation5 + $0x38] sm:$0xff]
        %v238 = vld [vmem:[#allocation5 + $0x40] sm:$0xff]
        %v239 = vld [vmem:[#allocation5 + $0x48] sm:$0xff]
        %v240 = vld [vmem:[#allocation5 + $0x50] sm:$0xff]
        %v241 = vld [vmem:[#allocation5 + $0x58] sm:$0xff]
        %v242 = vld [vmem:[#allocation5 + $0x60] sm:$0xff]
        %v243 = vld [vmem:[#allocation5 + $0x68] sm:$0xff]
        %v244 = vld [vmem:[#allocation5 + $0x70] sm:$0xff]
        %v245 = vld [vmem:[#allocation5 + $0x78] sm:$0xff]
        %v246 = vld [vmem:[#allocation5 + $0x80] sm:$0xff]
        %v247 = vld [vmem:[#allocation5 + $0x88] sm:$0xff]
        %v248 = vld [vmem:[#allocation5 + $0x90] sm:$0xff]
        %v249 = vld [vmem:[#allocation5 + $0x98] sm:$0xff]
        %v250 = vld [vmem:[#allocation5 + $0xa0] sm:$0xff]
        %v251 = vld [vmem:[#allocation5 + $0xa8] sm:$0xff]
        %v252 = vld [vmem:[#allocation5 + $0xb0] sm:$0xff]
        %v253 = vld [vmem:[#allocation5 + $0xb8] sm:$0xff]
        %v254 = vld [vmem:[#allocation5 + $0xc0] sm:$0xff]
        %v255 = vld [vmem:[#allocation5 + $0xc8] sm:$0xff]
        %v256 = vld [vmem:[#allocation5 + $0xd0] sm:$0xff]
        %v257 = vld [vmem:[#allocation5 + $0xd8] sm:$0xff]
        %v258 = vld [vmem:[#allocation5 + $0xe0] sm:$0xff]
        %v259 = vld [vmem:[#allocation5 + $0xe8] sm:$0xff]
        %v260 = vld [vmem:[#allocation5 + $0xf0] sm:$0xff]
        %v261 = vld [vmem:[#allocation5 + $0xf8] sm:$0xff]
        %v262 = vld [vmem:[#allocation7] sm:$0xff]
        %v263 = vld [vmem:[#allocation7 + $0x8] sm:$0xff]
        %v264 = vld [vmem:[#allocation7 + $0x10] sm:$0xff]
        %v265 = vld [vmem:[#allocation7 + $0x18] sm:$0xff]
        %v266 = vld [vmem:[#allocation7 + $0x20] sm:$0xff]
        %v267 = vld [vmem:[#allocation7 + $0x28] sm:$0xff]
        %v268 = vld [vmem:[#allocation7 + $0x30] sm:$0xff]
        %v269 = vld [vmem:[#allocation7 + $0x38] sm:$0xff]
        %v270 = vld [vmem:[#allocation7 + $0x40] sm:$0xff]
        %v271 = vld [vmem:[#allocation7 + $0x48] sm:$0xff]
        %v272 = vld [vmem:[#allocation7 + $0x50] sm:$0xff]
        %v273 = vld [vmem:[#allocation7 + $0x58] sm:$0xff]
        %v274 = vld [vmem:[#allocation7 + $0x60] sm:$0xff]
        %v275 = vld [vmem:[#allocation7 + $0x68] sm:$0xff]
        %v276 = vld [vmem:[#allocation7 + $0x70] sm:$0xff]
        %v277 = vld [vmem:[#allocation7 + $0x78] sm:$0xff]
        %v278 = vld [vmem:[#allocation7 + $0x80] sm:$0xff]
        %v279 = vld [vmem:[#allocation7 + $0x88] sm:$0xff]
        %v280 = vld [vmem:[#allocation7 + $0x90] sm:$0xff]
        %v281 = vld [vmem:[#allocation7 + $0x98] sm:$0xff]
        %v282 = vld [vmem:[#allocation7 + $0xa0] sm:$0xff]
        %v283 = vld [vmem:[#allocation7 + $0xa8] sm:$0xff]
        %v284 = vld [vmem:[#allocation7 + $0xb0] sm:$0xff]
        %v285 = vld [vmem:[#allocation7 + $0xb8] sm:$0xff]
        %v286 = vld [vmem:[#allocation7 + $0xc0] sm:$0xff]
        %v287 = vld [vmem:[#allocation7 + $0xc8] sm:$0xff]
        %v288 = vld [vmem:[#allocation7 + $0xd0] sm:$0xff]
        %v289 = vld [vmem:[#allocation7 + $0xd8] sm:$0xff]
        %v290 = vld [vmem:[#allocation7 + $0xe0] sm:$0xff]
        %v291 = vld [vmem:[#allocation7 + $0xe8] sm:$0xff]
        %v292 = vld [vmem:[#allocation7 + $0xf0] sm:$0xff]
        %v293 = vld [vmem:[#allocation7 + $0xf8] sm:$0xff]
        %v295 = vunpack.c.l.b16 %v229
        %v296 = vunpack.c.h.b16 %v229
        %v297 = vpack.c.b16 %v295, %v295
        %v298 = vpack.c.b16 %v296, %v296
        %v333 = vunpack.c.l.b16 %v262
        %v334 = vunpack.c.h.b16 %v262
        %v335 = vunpack.c.l.b16 %v263
        %v336 = vunpack.c.h.b16 %v263
        %v337 = vunpack.c.l.b16 %v264
        %v338 = vunpack.c.h.b16 %v264
        %v339 = vunpack.c.l.b16 %v265
        %v340 = vunpack.c.h.b16 %v265
        %v341 = vunpack.c.l.b16 %v266
        %v342 = vunpack.c.h.b16 %v266
        %v343 = vunpack.c.l.b16 %v267
        %v344 = vunpack.c.h.b16 %v267
        %v345 = vunpack.c.l.b16 %v268
        %v346 = vunpack.c.h.b16 %v268
        %v347 = vunpack.c.l.b16 %v269
        %v348 = vunpack.c.h.b16 %v269
        %v349 = vunpack.c.l.b16 %v270
        %v350 = vunpack.c.h.b16 %v270
        %v351 = vunpack.c.l.b16 %v271
        %v352 = vunpack.c.h.b16 %v271
        %v353 = vunpack.c.l.b16 %v272
        %v354 = vunpack.c.h.b16 %v272
        %v355 = vunpack.c.l.b16 %v273
        %v356 = vunpack.c.h.b16 %v273
        %v357 = vunpack.c.l.b16 %v274
        %v358 = vunpack.c.h.b16 %v274
        %v359 = vunpack.c.l.b16 %v275
        %v360 = vunpack.c.h.b16 %v275
        %v361 = vunpack.c.l.b16 %v276
        %v362 = vunpack.c.h.b16 %v276
        %v363 = vunpack.c.l.b16 %v277
        %v364 = vunpack.c.h.b16 %v277
        %v365 = vunpack.c.l.b16 %v278
        %v366 = vunpack.c.h.b16 %v278
        %v367 = vunpack.c.l.b16 %v279
        %v368 = vunpack.c.h.b16 %v279
        %v369 = vunpack.c.l.b16 %v280
        %v370 = vunpack.c.h.b16 %v280
        %v371 = vunpack.c.l.b16 %v281
        %v372 = vunpack.c.h.b16 %v281
        %v373 = vunpack.c.l.b16 %v282
        %v374 = vunpack.c.h.b16 %v282
        %v375 = vunpack.c.l.b16 %v283
        %v376 = vunpack.c.h.b16 %v283
        %v377 = vunpack.c.l.b16 %v284
        %v378 = vunpack.c.h.b16 %v284
        %v379 = vunpack.c.l.b16 %v285
        %v380 = vunpack.c.h.b16 %v285
        %v381 = vunpack.c.l.b16 %v286
        %v382 = vunpack.c.h.b16 %v286
        %v383 = vunpack.c.l.b16 %v287
        %v384 = vunpack.c.h.b16 %v287
        %v385 = vunpack.c.l.b16 %v288
        %v386 = vunpack.c.h.b16 %v288
        %v387 = vunpack.c.l.b16 %v289
        %v388 = vunpack.c.h.b16 %v289
        %v389 = vunpack.c.l.b16 %v290
        %v390 = vunpack.c.h.b16 %v290
        %v391 = vunpack.c.l.b16 %v291
        %v392 = vunpack.c.h.b16 %v291
        %v393 = vunpack.c.l.b16 %v292
        %v394 = vunpack.c.h.b16 %v292
        %v395 = vunpack.c.l.b16 %v293
        %v396 = vunpack.c.h.b16 %v293
        %v397 = vpack.c.b16 %v335, %v333
        %v398 = vpack.c.b16 %v336, %v334
        %v399 = vpack.c.b16 %v339, %v337
        %v400 = vpack.c.b16 %v340, %v338
        %v401 = vpack.c.b16 %v343, %v341
        %v402 = vpack.c.b16 %v344, %v342
        %v403 = vpack.c.b16 %v347, %v345
        %v404 = vpack.c.b16 %v348, %v346
        %v405 = vpack.c.b16 %v351, %v349
        %v406 = vpack.c.b16 %v352, %v350
        %v407 = vpack.c.b16 %v355, %v353
        %v408 = vpack.c.b16 %v356, %v354
        %v409 = vpack.c.b16 %v359, %v357
        %v410 = vpack.c.b16 %v360, %v358
        %v411 = vpack.c.b16 %v363, %v361
        %v412 = vpack.c.b16 %v364, %v362
        %v413 = vpack.c.b16 %v367, %v365
        %v414 = vpack.c.b16 %v368, %v366
        %v415 = vpack.c.b16 %v371, %v369
        %v416 = vpack.c.b16 %v372, %v370
        %v417 = vpack.c.b16 %v375, %v373
        %v418 = vpack.c.b16 %v376, %v374
        %v419 = vpack.c.b16 %v379, %v377
        %v420 = vpack.c.b16 %v380, %v378
        %v421 = vpack.c.b16 %v383, %v381
        %v422 = vpack.c.b16 %v384, %v382
        %v423 = vpack.c.b16 %v387, %v385
        %v424 = vpack.c.b16 %v388, %v386
        %v425 = vpack.c.b16 %v391, %v389
        %v426 = vpack.c.b16 %v392, %v390
        %v427 = vpack.c.b16 %v395, %v393
        %v428 = vpack.c.b16 %v396, %v394
        %461 = vmatpush.bf16.msra.mxu0 %v411
        %462 = vmatpush.bf16.msra.mxu0 %v409
        %463 = vmatpush.bf16.msra.mxu0 %v407
        %464 = vmatpush.bf16.msra.mxu0 %v405
        %465 = vmatpush.bf16.msra.mxu0 %v403
        %466 = vmatpush.bf16.msra.mxu0 %v401
        %467 = vmatpush.bf16.msra.mxu0 %v399
        %468 = vmatpush.bf16.msra.mxu0 %v397
        %469 = vmatmul.bf16.gmra.mxu0 %v297
        %v470 = vpop.f32.mrf.mxu0
        %v471 = vadd.f32 0.0, %v470
        %v472 = vpop.f32.mrf.mxu0
        %473 = vdwg.mxu0
        %474 = vmatpush.bf16.msra.mxu0 %v427
        %475 = vmatpush.bf16.msra.mxu0 %v425
        %476 = vmatpush.bf16.msra.mxu0 %v423
        %477 = vmatpush.bf16.msra.mxu0 %v421
        %478 = vmatpush.bf16.msra.mxu0 %v419
        %479 = vmatpush.bf16.msra.mxu0 %v417
        %480 = vmatpush.bf16.msra.mxu0 %v415
        %481 = vmatpush.bf16.msra.mxu0 %v413
        %482 = vmatmul.bf16.gmra.mxu0 %v298
        %v483 = vpop.f32.mrf.mxu0
        %v484 = vadd.f32 %v471, %v483
        %v485 = vpop.f32.mrf.mxu0
        %486 = vdwg.mxu0
        %487 = vmatpush.bf16.msra.mxu0 %v412
        %488 = vmatpush.bf16.msra.mxu0 %v410
        %489 = vmatpush.bf16.msra.mxu0 %v408
        %490 = vmatpush.bf16.msra.mxu0 %v406
        %491 = vmatpush.bf16.msra.mxu0 %v404
        %492 = vmatpush.bf16.msra.mxu0 %v402
        %493 = vmatpush.bf16.msra.mxu0 %v400
        %494 = vmatpush.bf16.msra.mxu0 %v398
        %495 = vmatmul.bf16.gmra.mxu0 %v297
        %v496 = vpop.f32.mrf.mxu0
        %v497 = vadd.f32 0.0, %v496
        %v498 = vpop.f32.mrf.mxu0
        %499 = vdwg.mxu0
        %500 = vmatpush.bf16.msra.mxu0 %v428
        %501 = vmatpush.bf16.msra.mxu0 %v426
        %502 = vmatpush.bf16.msra.mxu0 %v424
        %503 = vmatpush.bf16.msra.mxu0 %v422
        %504 = vmatpush.bf16.msra.mxu0 %v420
        %505 = vmatpush.bf16.msra.mxu0 %v418
        %506 = vmatpush.bf16.msra.mxu0 %v416
        %507 = vmatpush.bf16.msra.mxu0 %v414
        %508 = vmatmul.bf16.gmra.mxu0 %v298
        %v509 = vpop.f32.mrf.mxu0
        %v510 = vadd.f32 %v497, %v509
        %v511 = vpop.f32.mrf.mxu0
        %512 = vdwg.mxu0
        %v545 = vunpack.c.l.b16 %v230
        %v546 = vunpack.c.h.b16 %v230
        %v547 = vunpack.c.l.b16 %v231
        %v548 = vunpack.c.h.b16 %v231
        %v549 = vunpack.c.l.b16 %v232
        %v550 = vunpack.c.h.b16 %v232
        %v551 = vunpack.c.l.b16 %v233
        %v552 = vunpack.c.h.b16 %v233
        %v553 = vunpack.c.l.b16 %v234
        %v554 = vunpack.c.h.b16 %v234
        %v555 = vunpack.c.l.b16 %v235
        %v556 = vunpack.c.h.b16 %v235
        %v557 = vunpack.c.l.b16 %v236
        %v558 = vunpack.c.h.b16 %v236
        %v559 = vunpack.c.l.b16 %v237
        %v560 = vunpack.c.h.b16 %v237
        %v561 = vunpack.c.l.b16 %v238
        %v562 = vunpack.c.h.b16 %v238
        %v563 = vunpack.c.l.b16 %v239
        %v564 = vunpack.c.h.b16 %v239
        %v565 = vunpack.c.l.b16 %v240
        %v566 = vunpack.c.h.b16 %v240
        %v567 = vunpack.c.l.b16 %v241
        %v568 = vunpack.c.h.b16 %v241
        %v569 = vunpack.c.l.b16 %v242
        %v570 = vunpack.c.h.b16 %v242
        %v571 = vunpack.c.l.b16 %v243
        %v572 = vunpack.c.h.b16 %v243
        %v573 = vunpack.c.l.b16 %v244
        %v574 = vunpack.c.h.b16 %v244
        %v575 = vunpack.c.l.b16 %v245
        %v576 = vunpack.c.h.b16 %v245
        %v577 = vunpack.c.l.b16 %v246
        %v578 = vunpack.c.h.b16 %v246
        %v579 = vunpack.c.l.b16 %v247
        %v580 = vunpack.c.h.b16 %v247
        %v581 = vunpack.c.l.b16 %v248
        %v582 = vunpack.c.h.b16 %v248
        %v583 = vunpack.c.l.b16 %v249
        %v584 = vunpack.c.h.b16 %v249
        %v585 = vunpack.c.l.b16 %v250
        %v586 = vunpack.c.h.b16 %v250
        %v587 = vunpack.c.l.b16 %v251
        %v588 = vunpack.c.h.b16 %v251
        %v589 = vunpack.c.l.b16 %v252
        %v590 = vunpack.c.h.b16 %v252
        %v591 = vunpack.c.l.b16 %v253
        %v592 = vunpack.c.h.b16 %v253
        %v593 = vunpack.c.l.b16 %v254
        %v594 = vunpack.c.h.b16 %v254
        %v595 = vunpack.c.l.b16 %v255
        %v596 = vunpack.c.h.b16 %v255
        %v597 = vunpack.c.l.b16 %v256
        %v598 = vunpack.c.h.b16 %v256
        %v599 = vunpack.c.l.b16 %v257
        %v600 = vunpack.c.h.b16 %v257
        %v601 = vunpack.c.l.b16 %v258
        %v602 = vunpack.c.h.b16 %v258
        %v603 = vunpack.c.l.b16 %v259
        %v604 = vunpack.c.h.b16 %v259
        %v605 = vunpack.c.l.b16 %v260
        %v606 = vunpack.c.h.b16 %v260
        %v607 = vunpack.c.l.b16 %v261
        %v608 = vunpack.c.h.b16 %v261
        %v609 = vpack.c.b16 %v547, %v545
        %v610 = vpack.c.b16 %v548, %v546
        %v611 = vpack.c.b16 %v551, %v549
        %v612 = vpack.c.b16 %v552, %v550
        %v613 = vpack.c.b16 %v555, %v553
        %v614 = vpack.c.b16 %v556, %v554
        %v615 = vpack.c.b16 %v559, %v557
        %v616 = vpack.c.b16 %v560, %v558
        %v617 = vpack.c.b16 %v563, %v561
        %v618 = vpack.c.b16 %v564, %v562
        %v619 = vpack.c.b16 %v567, %v565
        %v620 = vpack.c.b16 %v568, %v566
        %v621 = vpack.c.b16 %v571, %v569
        %v622 = vpack.c.b16 %v572, %v570
        %v623 = vpack.c.b16 %v575, %v573
        %v624 = vpack.c.b16 %v576, %v574
        %v625 = vpack.c.b16 %v579, %v577
        %v626 = vpack.c.b16 %v580, %v578
        %v627 = vpack.c.b16 %v583, %v581
        %v628 = vpack.c.b16 %v584, %v582
        %v629 = vpack.c.b16 %v587, %v585
        %v630 = vpack.c.b16 %v588, %v586
        %v631 = vpack.c.b16 %v591, %v589
        %v632 = vpack.c.b16 %v592, %v590
        %v633 = vpack.c.b16 %v595, %v593
        %v634 = vpack.c.b16 %v596, %v594
        %v635 = vpack.c.b16 %v599, %v597
        %v636 = vpack.c.b16 %v600, %v598
        %v637 = vpack.c.b16 %v603, %v601
        %v638 = vpack.c.b16 %v604, %v602
        %v639 = vpack.c.b16 %v607, %v605
        %v640 = vpack.c.b16 %v608, %v606
        %673 = vmatpush.bf16.msra.mxu0 %v623
        %674 = vmatpush.bf16.msra.mxu0 %v621
        %675 = vmatpush.bf16.msra.mxu0 %v619
        %676 = vmatpush.bf16.msra.mxu0 %v617
        %677 = vmatpush.bf16.msra.mxu0 %v615
        %678 = vmatpush.bf16.msra.mxu0 %v613
        %679 = vmatpush.bf16.msra.mxu0 %v611
        %680 = vmatpush.bf16.msra.mxu0 %v609
        %681 = vmatmul.bf16.gmra.mxu0 %v297
        %v682 = vpop.f32.mrf.mxu0
        %v683 = vadd.f32 %v484, %v682
        %v684 = vpop.f32.mrf.mxu0
        %685 = vdwg.mxu0
        %686 = vmatpush.bf16.msra.mxu0 %v639
        %687 = vmatpush.bf16.msra.mxu0 %v637
        %688 = vmatpush.bf16.msra.mxu0 %v635
        %689 = vmatpush.bf16.msra.mxu0 %v633
        %690 = vmatpush.bf16.msra.mxu0 %v631
        %691 = vmatpush.bf16.msra.mxu0 %v629
        %692 = vmatpush.bf16.msra.mxu0 %v627
        %693 = vmatpush.bf16.msra.mxu0 %v625
        %694 = vmatmul.bf16.gmra.mxu0 %v298
        %v695 = vpop.f32.mrf.mxu0
        %v696 = vadd.f32 %v683, %v695
        %v697 = vpop.f32.mrf.mxu0
        %698 = vdwg.mxu0
        %699 = vmatpush.bf16.msra.mxu0 %v624
        %700 = vmatpush.bf16.msra.mxu0 %v622
        %701 = vmatpush.bf16.msra.mxu0 %v620
        %702 = vmatpush.bf16.msra.mxu0 %v618
        %703 = vmatpush.bf16.msra.mxu0 %v616
        %704 = vmatpush.bf16.msra.mxu0 %v614
        %705 = vmatpush.bf16.msra.mxu0 %v612
        %706 = vmatpush.bf16.msra.mxu0 %v610
        %707 = vmatmul.bf16.gmra.mxu0 %v297
        %v708 = vpop.f32.mrf.mxu0
        %v709 = vadd.f32 %v510, %v708
        %v710 = vpop.f32.mrf.mxu0
        %711 = vdwg.mxu0
        %712 = vmatpush.bf16.msra.mxu0 %v640
        %713 = vmatpush.bf16.msra.mxu0 %v638
        %714 = vmatpush.bf16.msra.mxu0 %v636
        %715 = vmatpush.bf16.msra.mxu0 %v634
        %716 = vmatpush.bf16.msra.mxu0 %v632
        %717 = vmatpush.bf16.msra.mxu0 %v630
        %718 = vmatpush.bf16.msra.mxu0 %v628
        %719 = vmatpush.bf16.msra.mxu0 %v626
        %720 = vmatmul.bf16.gmra.mxu0 %v298
        %v721 = vpop.f32.mrf.mxu0
        %v722 = vadd.f32 %v709, %v721
        %v723 = vpop.f32.mrf.mxu0
        %724 = vdwg.mxu0
        %v725 = vunpack.c.l.bf16 %v229
        %v726 = vunpack.c.h.bf16 %v229
        %v729 = vrot.slane %v726, 6
        %vm730 = vcmask 1041408
        %v731 = vsel %vm730, %v725, %v729
        %v733 = vsub.f32 %v222, %v731
        %735 = vst [vmem:[#allocation1] ss:$4 sm:$0xff] %v733
        %v736 = vld.sshfl [vmem:[#allocation1] sm:$0xff pattern:$0x73625140]
        %v737 = vld.sshfl [vmem:[#allocation1 + $0x8] sm:$0xff pattern:$0x73625140]
        %v740 = vpack.c.bf16 %v736, %v736
        %v741 = vpack.c.bf16 %v737, %v737
        %742 = vmatpush.bf16.msra.mxu0 %v623
        %743 = vmatpush.bf16.msra.mxu0 %v621
        %744 = vmatpush.bf16.msra.mxu0 %v619
        %745 = vmatpush.bf16.msra.mxu0 %v617
        %746 = vmatpush.bf16.msra.mxu0 %v615
        %747 = vmatpush.bf16.msra.mxu0 %v613
        %748 = vmatpush.bf16.msra.mxu0 %v611
        %749 = vmatpush.bf16.msra.mxu0 %v609
        %750 = vmatmul.bf16.gmra.mxu0 %v740
        %v751 = vpop.f32.mrf.mxu0
        %v752 = vadd.f32 0.0, %v751
        %v753 = vpop.f32.mrf.mxu0
        %754 = vdwg.mxu0
        %755 = vmatpush.bf16.msra.mxu0 %v639
        %756 = vmatpush.bf16.msra.mxu0 %v637
        %757 = vmatpush.bf16.msra.mxu0 %v635
        %758 = vmatpush.bf16.msra.mxu0 %v633
        %759 = vmatpush.bf16.msra.mxu0 %v631
        %760 = vmatpush.bf16.msra.mxu0 %v629
        %761 = vmatpush.bf16.msra.mxu0 %v627
        %762 = vmatpush.bf16.msra.mxu0 %v625
        %763 = vmatmul.bf16.gmra.mxu0 %v741
        %v764 = vpop.f32.mrf.mxu0
        %v765 = vadd.f32 %v752, %v764
        %v766 = vpop.f32.mrf.mxu0
        %767 = vdwg.mxu0
        %768 = vmatpush.bf16.msra.mxu0 %v624
        %769 = vmatpush.bf16.msra.mxu0 %v622
        %770 = vmatpush.bf16.msra.mxu0 %v620
        %771 = vmatpush.bf16.msra.mxu0 %v618
        %772 = vmatpush.bf16.msra.mxu0 %v616
        %773 = vmatpush.bf16.msra.mxu0 %v614
        %774 = vmatpush.bf16.msra.mxu0 %v612
        %775 = vmatpush.bf16.msra.mxu0 %v610
        %776 = vmatmul.bf16.gmra.mxu0 %v740
        %v777 = vpop.f32.mrf.mxu0
        %v778 = vadd.f32 0.0, %v777
        %v779 = vpop.f32.mrf.mxu0
        %780 = vdwg.mxu0
        %781 = vmatpush.bf16.msra.mxu0 %v640
        %782 = vmatpush.bf16.msra.mxu0 %v638
        %783 = vmatpush.bf16.msra.mxu0 %v636
        %784 = vmatpush.bf16.msra.mxu0 %v634
        %785 = vmatpush.bf16.msra.mxu0 %v632
        %786 = vmatpush.bf16.msra.mxu0 %v630
        %787 = vmatpush.bf16.msra.mxu0 %v628
        %788 = vmatpush.bf16.msra.mxu0 %v626
        %789 = vmatmul.bf16.gmra.mxu0 %v741
        %v790 = vpop.f32.mrf.mxu0
        %v791 = vadd.f32 %v778, %v790
        %v792 = vpop.f32.mrf.mxu0
        %793 = vdwg.mxu0
        %v794 = vadd.f32 %v696, %v765
        %v795 = vadd.f32 %v722, %v791
        %v798 = vrot.slane %v795, 6
        %v799 = vsel %vm730, %v794, %v798
        %801 = vst [vmem:[%s221] sm:$0xf] %v799
        %s802 = sand.u32 %s97, 1
        %s803 = scalar_lea.sflag [#allocation4], %s802
        %s804 = sand.u32 %s97, 1
        %s805 = smul.addr %s804, 4
        %s806 = scalar_lea.vmem [#allocation8], %s805
        // Predicated region
        $region45: #{tpu_custom_call.1} parent=31 // pred_check
          %p807 = pneg %p107
        $region46: #{tpu_custom_call.1} parent=31 // pred_check_branch
          %809 = sbr.rel (%p807) target = $region48
        $region47: #{tpu_custom_call.1} parent=31 // pred_region
          %811 = vsyncadd %s803, 0
          %s812 = smul.addr %s21, 2
          %s813 = smul.addr %s812, 2
          %s814 = scalar_lea.hbm %s3, %s813
          %s816 = sshll.u32 %s806, 4
          %s817 = int_to_ptr.vmem [resolvable:$true] %s816
          %s818 = sshll.u32 %s814, 4
          %s819 = int_to_ptr.hbm [resolvable:$true] %s818
          %821 = dma.vmem_to_hbm [thread:$0]  %s817, 64, %s819, %s803
        $region48: #{tpu_custom_call.1} parent=31 // pred_fallthru
          _
      $region32: #{tpu_custom_call.1} parent=5 // pred_fallthru
        _
      %p822 = scmp.le.s32.totalorder 2, %s16
      // Predicated region
      $region49: #{tpu_custom_call.1} parent=5 // pred_check
        %p823 = pneg %p822
      $region50: #{tpu_custom_call.1} parent=5 // pred_check_branch
        %825 = sbr.rel (%p823) target = $region52
      $region51: #{tpu_custom_call.1} parent=5 // pred_region
        %s826 = ssub.s32 %s16, 2
        // Predicated region
        $region53: #{tpu_custom_call.1} parent=51 // pred_check
          %p827 = pneg %p113
        $region54: #{tpu_custom_call.1} parent=51 // pred_check_branch
          %829 = sbr.rel (%p827) target = $region56
        $region55: #{tpu_custom_call.1} parent=51 // pred_region
          %s830 = sand.u32 %s98, 1
          %s831 = scalar_lea.sflag [#allocation4], %s830
          %s832 = sand.u32 %s98, 1
          %s833 = smul.addr %s832, 4
          %s834 = scalar_lea.vmem [#allocation8], %s833
          %836 = dma.done %s831, 64
        $region56: #{tpu_custom_call.1} parent=51 // pred_fallthru
          _
      $region52: #{tpu_custom_call.1} parent=5 // pred_fallthru
        _
    $region6: #{tpu_custom_call.1} parent=1 // loop_footer
      %s20 = sadd.s32 1, %s16
    $region7: #{tpu_custom_call.1} parent=1 // loop_footer_branch
      %15 = sbr.rel target = $region3
    $region8: #{tpu_custom_call.1} parent=1 // loop_exit
      _
    %837 = vsyncpa [#allocation3], 1
    %s838 = scalar_lea.sflag [#allocation3], 1
    %839 = vsyncpa %s838, 1
    %840 = vsyncpa [#allocation6], 1
    %841 = vsyncpa [#allocation4], 1
    %s842 = scalar_lea.sflag [#allocation4], 1
    %843 = vsyncpa %s842, 1

</llo_original>
